<compile_context>
chip_gen: v6e
topology: v6e:2x2x1
jax: 0.10.0
libtpu: 0.0.40
codegen_flags: <defaults>
</compile_context>

<pallas_src>
import functools

import numpy as np
import jax
import jax.numpy as jnp
from jax.experimental import pallas as pl
from jax.experimental.pallas import tpu as pltpu


def memory_augment_kernel(feat_ref, keys_t_ref, mem_ref, out_ref, *, top_k):
    """feat (B, D) f32, keys_t (D, M) f32 (pre-normalized, pre-transposed),
    mem (M, TL) bf16, out (B, TL) f32."""
    f = feat_ref[...]                                            # (B, D)

    # Normalize features; keys are already unit-norm (done once in the wrapper).
    eps = jnp.float32(1e-8)                                      # cosine_similarity eps
    inv_f = jax.lax.rsqrt(
        jnp.maximum(jnp.sum(f * f, axis=-1, keepdims=True), eps * eps))
    f_hat = f * inv_f                                            # (B, D)

    # Cosine similarity: (B, D) @ (D, M) straight onto the MXU (no transpose).
    sim = jnp.dot(f_hat, keys_t_ref[...],
                  preferred_element_type=jnp.float32)            # (B, M)

    B, M = sim.shape
    idx = jax.lax.broadcasted_iota(jnp.int32, (B, M), 1)

    # Fused iterative top-k + weight accumulation (top_k is small & static):
    # each round picks the (first) argmax, accumulates relu(sim) there, masks it.
    remaining = sim
    w = jnp.zeros((B, M), dtype=jnp.float32)
    for _ in range(top_k):
        cur_max = jnp.max(remaining, axis=-1, keepdims=True)
        is_max = remaining == cur_max
        first_idx = jnp.min(jnp.where(is_max, idx, M), axis=-1, keepdims=True)
        pick = idx == first_idx
        w = w + jnp.where(pick, jnp.maximum(sim, 0.0), 0.0)
        remaining = jnp.where(pick, -jnp.inf, remaining)

    # Normalize selected weights (eps guard against the all-non-positive case).
    denom = jnp.maximum(jnp.sum(w, axis=-1, keepdims=True), jnp.float32(1e-12))
    w = w / denom                                                # (B, M) f32

    # Weighted gather == dense (B, M) @ (M, TL) matmul; bf16 MXU, f32 accumulate.
    out_ref[...] = jnp.dot(w.astype(mem_ref.dtype), mem_ref[...],
                           preferred_element_type=jnp.float32)


def _pick_l_tile(L, M, elem_bytes=2, budget_bytes=8 << 20):
    """Largest lane-dense L tile whose double-buffered mem stream fits a modest
    VMEM budget (safe on v7x's 64 MiB), forcing >=2 tiles when L allows so the
    pipeline / megacore split actually engage."""
    candidates = [t for t in (8192, 4096, 2048, 1024, 512, 256, 128)
                  if t < L and L % t == 0 and 2 * M * t * elem_bytes <= budget_bytes]
    return candidates[0] if candidates else L


def memory_forward(features, keys, memory, top_k):
    """features: (B, D) or (D,); keys: (M, F0, F1); memory: (M, P0, P1)."""
    if features.ndim == 1:
        features = features[None, :]
    features = features.astype(jnp.float32)
    B, D = features.shape
    M = keys.shape[0]

    keys_flat = keys.reshape(M, -1).astype(jnp.float32)
    assert keys_flat.shape[1] == D, "feature dim must match flattened key dim"

    # Pre-normalize keys (parameter-only work) and pre-transpose to (D, M) so
    # the in-kernel similarity matmul is NN with no XLU transpose.
    eps = jnp.float32(1e-8)
    k_norm = jnp.maximum(
        jnp.sqrt(jnp.sum(keys_flat * keys_flat, axis=-1, keepdims=True)), eps)
    keys_t = (keys_flat / k_norm).T                              # (D, M) f32

    P0, P1 = memory.shape[1], memory.shape[2]
    L = P0 * P1
    # bf16 storage for the dominant HBM stream; accumulation stays f32 on the MXU.
    mem_flat = memory.reshape(M, L).astype(jnp.bfloat16)         # (M, L) bf16

    k = min(int(top_k), M)
    TL = _pick_l_tile(L, M)
    grid = (L // TL,)

    out = pl.pallas_call(
        functools.partial(memory_augment_kernel, top_k=k),
        out_shape=jax.ShapeDtypeStruct((B, L), jnp.float32),
        grid_spec=pltpu.PrefetchScalarGridSpec(
            num_scalar_prefetch=0,
            grid=grid,
            in_specs=[
                pl.BlockSpec((B, D), lambda j: (0, 0)),   # resident across L tiles
                pl.BlockSpec((D, M), lambda j: (0, 0)),   # resident across L tiles
                pl.BlockSpec((M, TL), lambda j: (0, j)),  # streamed & double-buffered
            ],
            out_specs=pl.BlockSpec((B, TL), lambda j: (0, j)),   # lane-dense stores
        ),
        compiler_params=pltpu.CompilerParams(
            dimension_semantics=("parallel",),            # v7x: split L tiles on 2 TCs
            vmem_limit_bytes=32 * 1024 * 1024,
        ),
    )(features, keys_t, mem_flat)
    return out.reshape(B, P0, P1)


def memory_forward_reference(features, keys, memory, top_k):
    """Pure-JAX (f32) reference of the same semantics (for correctness check)."""
    if features.ndim == 1:
        features = features[None, :]
    M = keys.shape[0]
    keys_flat = keys.reshape(M, -1)
    outs = []
    for b in range(features.shape[0]):
        f = features[b]
        fn = jnp.maximum(jnp.linalg.norm(f), 1e-8)
        kn = jnp.maximum(jnp.linalg.norm(keys_flat, axis=-1), 1e-8)
        sim = (keys_flat @ f) / (fn * kn)
        top_sim, top_ids = jax.lax.top_k(sim, min(top_k, M))
        top_sim = jnp.maximum(top_sim, 0.0)
        top_sim = top_sim / top_sim.sum()
        ctx = jnp.einsum("k,kpl->pl", top_sim, memory[top_ids])
        outs.append(ctx)
    return jnp.stack(outs)


if __name__ == "__main__":
    # Small shapes consistent with the module's parameter layout.
    TOP_K = 4
    MEMORY_SIZE = 32          # memory_size
    FEATURE_SHAPE = (1, 128)  # feature_shape  -> D = 128
    PROMPT_SHAPE = (8, 256)   # prompt_shape   -> ctx (P0, P1), L = 2048
    BATCH = 2

    key = jax.random.PRNGKey(0)
    k_feat, k_keys, k_mem = jax.random.split(key, 3)

    # Deterministic synthetic parameters ("as-if-trained"; the PyTorch __init__
    # zeros would make cosine similarity degenerate).
    features = jax.random.normal(
        k_feat, (BATCH, FEATURE_SHAPE[0] * FEATURE_SHAPE[1]), jnp.float32)
    keys_p = jax.random.normal(
        k_keys, (MEMORY_SIZE, FEATURE_SHAPE[0], FEATURE_SHAPE[1]), jnp.float32)
    memory_p = jax.random.normal(
        k_mem, (MEMORY_SIZE, PROMPT_SHAPE[0], PROMPT_SHAPE[1]), jnp.float32)

    out = jax.block_until_ready(memory_forward(features, keys_p, memory_p, TOP_K))
    ref = jax.block_until_ready(
        memory_forward_reference(features, keys_p, memory_p, TOP_K))

    assert out.shape == (BATCH, PROMPT_SHAPE[0], PROMPT_SHAPE[1])
    # Tolerance reflects bf16 storage of the memory bank / weights on the MXU
    # (f32 accumulation); the f32 reference keeps full precision.
    np.testing.assert_allclose(np.asarray(out), np.asarray(ref), atol=2e-2, rtol=2e-2)

    print("KERNEL_OK")
</pallas_src>

<mosaic_0001>
module attributes {stable_mosaic.version = 11 : i64} {
  func.func @memory_augment_kernel(%arg0: i32, %arg1: memref<2x128xf32, #tpu.memory_space<vmem>>, %arg2: memref<128x32xf32, #tpu.memory_space<vmem>>, %arg3: memref<32x1024xbf16, #tpu.memory_space<vmem>>, %arg4: memref<2x1024xf32, #tpu.memory_space<vmem>>) attributes {dimension_semantics = [#tpu.dimension_semantics<parallel>], iteration_bounds = array<i64: 2>, scalar_prefetch = 0 : i64, scratch_operands = 0 : i64, tpu.core_type = #tpu.core_type<tc>, window_params = [{pipeline_mode = #tpu.pipeline_mode<synchronous>, transform_indices = @transform_0, window_bounds = array<i64: 2, 128>}, {pipeline_mode = #tpu.pipeline_mode<synchronous>, transform_indices = @transform_1, window_bounds = array<i64: 128, 32>}, {transform_indices = @transform_2, window_bounds = array<i64: 32, 1024>}, {transform_indices = @transform_3, window_bounds = array<i64: 2, 1024>}]} {
    %c0 = arith.constant 0 : index
    %c0_0 = arith.constant 0 : index
    %0 = vector.load %arg1[%c0, %c0_0] : memref<2x128xf32, #tpu.memory_space<vmem>>, vector<2x128xf32>
    %1 = arith.mulf %0, %0 : vector<2x128xf32>
    %cst = arith.constant dense<0.000000e+00> : vector<2xf32>
    %2 = vector.multi_reduction <add>, %1, %cst [1] : vector<2x128xf32> to vector<2xf32>
    %3 = vector.shape_cast %2 : vector<2xf32> to vector<2x1xf32>
    %cst_1 = arith.constant 9.99999993E-9 : f32
    %cst_2 = arith.constant 9.99999993E-9 : f32
    %4 = arith.mulf %cst_1, %cst_2 : f32
    %5 = vector.broadcast %4 : f32 to vector<2x1xf32>
    %6 = arith.maximumf %3, %5 : vector<2x1xf32>
    %7 = math.rsqrt %6 : vector<2x1xf32>
    %8 = vector.broadcast %7 : vector<2x1xf32> to vector<2x128xf32>
    %9 = arith.mulf %0, %8 : vector<2x128xf32>
    %c0_3 = arith.constant 0 : index
    %c0_4 = arith.constant 0 : index
    %10 = vector.load %arg2[%c0_3, %c0_4] : memref<128x32xf32, #tpu.memory_space<vmem>>, vector<128x32xf32>
    %cst_5 = arith.constant dense<0.000000e+00> : vector<2x32xf32>
    %11 = tpu.matmul %9, %10, %cst_5 {dimension_numbers = #tpu.dot_dimension_numbers<[1], [0], [0], [1], [0, 0, 1, 1], [], []>} : vector<2x128xf32>, vector<128x32xf32>, vector<2x32xf32> -> vector<2x32xf32>
    %12 = tpu.iota {dimensions = array<i32: 1>} : vector<2x32xi32>
    %cst_6 = arith.constant 0.000000e+00 : f32
    %13 = vector.broadcast %cst_6 : f32 to vector<2x32xf32>
    %cst_7 = arith.constant dense<0xFF800000> : vector<2xf32>
    %14 = vector.multi_reduction <maximumf>, %11, %cst_7 [1] : vector<2x32xf32> to vector<2xf32>
    %15 = vector.shape_cast %14 : vector<2xf32> to vector<2x1xf32>
    %16 = vector.broadcast %15 : vector<2x1xf32> to vector<2x32xf32>
    %17 = arith.cmpf oeq, %11, %16 : vector<2x32xf32>
    %c32_i32 = arith.constant 32 : i32
    %18 = vector.broadcast %c32_i32 : i32 to vector<2x32xi32>
    %19 = arith.select %17, %12, %18 : vector<2x32xi1>, vector<2x32xi32>
    %cst_8 = arith.constant dense<2147483647> : vector<2xi32>
    %20 = vector.multi_reduction <minsi>, %19, %cst_8 [1] : vector<2x32xi32> to vector<2xi32>
    %21 = vector.shape_cast %20 : vector<2xi32> to vector<2x1xi32>
    %22 = vector.broadcast %21 : vector<2x1xi32> to vector<2x32xi32>
    %23 = arith.cmpi eq, %12, %22 : vector<2x32xi32>
    %cst_9 = arith.constant 0.000000e+00 : f32
    %24 = vector.broadcast %cst_9 : f32 to vector<2x32xf32>
    %25 = arith.maximumf %11, %24 : vector<2x32xf32>
    %cst_10 = arith.constant 0.000000e+00 : f32
    %26 = vector.broadcast %cst_10 : f32 to vector<2x32xf32>
    %27 = arith.select %23, %25, %26 : vector<2x32xi1>, vector<2x32xf32>
    %28 = arith.addf %13, %27 : vector<2x32xf32>
    %cst_11 = arith.constant 0xFF800000 : f32
    %29 = vector.broadcast %cst_11 : f32 to vector<2x32xf32>
    %30 = arith.select %23, %29, %11 : vector<2x32xi1>, vector<2x32xf32>
    %cst_12 = arith.constant dense<0xFF800000> : vector<2xf32>
    %31 = vector.multi_reduction <maximumf>, %30, %cst_12 [1] : vector<2x32xf32> to vector<2xf32>
    %32 = vector.shape_cast %31 : vector<2xf32> to vector<2x1xf32>
    %33 = vector.broadcast %32 : vector<2x1xf32> to vector<2x32xf32>
    %34 = arith.cmpf oeq, %30, %33 : vector<2x32xf32>
    %c32_i32_13 = arith.constant 32 : i32
    %35 = vector.broadcast %c32_i32_13 : i32 to vector<2x32xi32>
    %36 = arith.select %34, %12, %35 : vector<2x32xi1>, vector<2x32xi32>
    %cst_14 = arith.constant dense<2147483647> : vector<2xi32>
    %37 = vector.multi_reduction <minsi>, %36, %cst_14 [1] : vector<2x32xi32> to vector<2xi32>
    %38 = vector.shape_cast %37 : vector<2xi32> to vector<2x1xi32>
    %39 = vector.broadcast %38 : vector<2x1xi32> to vector<2x32xi32>
    %40 = arith.cmpi eq, %12, %39 : vector<2x32xi32>
    %cst_15 = arith.constant 0.000000e+00 : f32
    %41 = vector.broadcast %cst_15 : f32 to vector<2x32xf32>
    %42 = arith.maximumf %11, %41 : vector<2x32xf32>
    %cst_16 = arith.constant 0.000000e+00 : f32
    %43 = vector.broadcast %cst_16 : f32 to vector<2x32xf32>
    %44 = arith.select %40, %42, %43 : vector<2x32xi1>, vector<2x32xf32>
    %45 = arith.addf %28, %44 : vector<2x32xf32>
    %cst_17 = arith.constant 0xFF800000 : f32
    %46 = vector.broadcast %cst_17 : f32 to vector<2x32xf32>
    %47 = arith.select %40, %46, %30 : vector<2x32xi1>, vector<2x32xf32>
    %cst_18 = arith.constant dense<0xFF800000> : vector<2xf32>
    %48 = vector.multi_reduction <maximumf>, %47, %cst_18 [1] : vector<2x32xf32> to vector<2xf32>
    %49 = vector.shape_cast %48 : vector<2xf32> to vector<2x1xf32>
    %50 = vector.broadcast %49 : vector<2x1xf32> to vector<2x32xf32>
    %51 = arith.cmpf oeq, %47, %50 : vector<2x32xf32>
    %c32_i32_19 = arith.constant 32 : i32
    %52 = vector.broadcast %c32_i32_19 : i32 to vector<2x32xi32>
    %53 = arith.select %51, %12, %52 : vector<2x32xi1>, vector<2x32xi32>
    %cst_20 = arith.constant dense<2147483647> : vector<2xi32>
    %54 = vector.multi_reduction <minsi>, %53, %cst_20 [1] : vector<2x32xi32> to vector<2xi32>
    %55 = vector.shape_cast %54 : vector<2xi32> to vector<2x1xi32>
    %56 = vector.broadcast %55 : vector<2x1xi32> to vector<2x32xi32>
    %57 = arith.cmpi eq, %12, %56 : vector<2x32xi32>
    %cst_21 = arith.constant 0.000000e+00 : f32
    %58 = vector.broadcast %cst_21 : f32 to vector<2x32xf32>
    %59 = arith.maximumf %11, %58 : vector<2x32xf32>
    %cst_22 = arith.constant 0.000000e+00 : f32
    %60 = vector.broadcast %cst_22 : f32 to vector<2x32xf32>
    %61 = arith.select %57, %59, %60 : vector<2x32xi1>, vector<2x32xf32>
    %62 = arith.addf %45, %61 : vector<2x32xf32>
    %cst_23 = arith.constant 0xFF800000 : f32
    %63 = vector.broadcast %cst_23 : f32 to vector<2x32xf32>
    %64 = arith.select %57, %63, %47 : vector<2x32xi1>, vector<2x32xf32>
    %cst_24 = arith.constant dense<0xFF800000> : vector<2xf32>
    %65 = vector.multi_reduction <maximumf>, %64, %cst_24 [1] : vector<2x32xf32> to vector<2xf32>
    %66 = vector.shape_cast %65 : vector<2xf32> to vector<2x1xf32>
    %67 = vector.broadcast %66 : vector<2x1xf32> to vector<2x32xf32>
    %68 = arith.cmpf oeq, %64, %67 : vector<2x32xf32>
    %c32_i32_25 = arith.constant 32 : i32
    %69 = vector.broadcast %c32_i32_25 : i32 to vector<2x32xi32>
    %70 = arith.select %68, %12, %69 : vector<2x32xi1>, vector<2x32xi32>
    %cst_26 = arith.constant dense<2147483647> : vector<2xi32>
    %71 = vector.multi_reduction <minsi>, %70, %cst_26 [1] : vector<2x32xi32> to vector<2xi32>
    %72 = vector.shape_cast %71 : vector<2xi32> to vector<2x1xi32>
    %73 = vector.broadcast %72 : vector<2x1xi32> to vector<2x32xi32>
    %74 = arith.cmpi eq, %12, %73 : vector<2x32xi32>
    %cst_27 = arith.constant 0.000000e+00 : f32
    %75 = vector.broadcast %cst_27 : f32 to vector<2x32xf32>
    %76 = arith.maximumf %11, %75 : vector<2x32xf32>
    %cst_28 = arith.constant 0.000000e+00 : f32
    %77 = vector.broadcast %cst_28 : f32 to vector<2x32xf32>
    %78 = arith.select %74, %76, %77 : vector<2x32xi1>, vector<2x32xf32>
    %79 = arith.addf %62, %78 : vector<2x32xf32>
    %cst_29 = arith.constant dense<0.000000e+00> : vector<2xf32>
    %80 = vector.multi_reduction <add>, %79, %cst_29 [1] : vector<2x32xf32> to vector<2xf32>
    %81 = vector.shape_cast %80 : vector<2xf32> to vector<2x1xf32>
    %cst_30 = arith.constant 9.99999996E-13 : f32
    %82 = vector.broadcast %cst_30 : f32 to vector<2x1xf32>
    %83 = arith.maximumf %81, %82 : vector<2x1xf32>
    %84 = vector.broadcast %83 : vector<2x1xf32> to vector<2x32xf32>
    %85 = arith.divf %79, %84 : vector<2x32xf32>
    %86 = arith.truncf %85 : vector<2x32xf32> to vector<2x32xbf16>
    %c0_31 = arith.constant 0 : index
    %c0_32 = arith.constant 0 : index
    %87 = vector.load %arg3[%c0_31, %c0_32] : memref<32x1024xbf16, #tpu.memory_space<vmem>>, vector<32x1024xbf16>
    %cst_33 = arith.constant dense<0.000000e+00> : vector<2x1024xf32>
    %88 = tpu.matmul %86, %87, %cst_33 {dimension_numbers = #tpu.dot_dimension_numbers<[1], [0], [0], [1], [0, 0, 1, 1], [], []>} : vector<2x32xbf16>, vector<32x1024xbf16>, vector<2x1024xf32> -> vector<2x1024xf32>
    %c0_34 = arith.constant 0 : index
    %c0_35 = arith.constant 0 : index
    %89 = vector.load %arg4[%c0_34, %c0_35] : memref<2x1024xf32, #tpu.memory_space<vmem>>, vector<2x1024xf32>
    tpu.vector_store %arg4[%c0_34, %c0_35], %88 {strides = array<i32>} : memref<2x1024xf32, #tpu.memory_space<vmem>>, vector<2x1024xf32>,
    return
  }
  func.func @transform_0(%arg0: i32) -> (i32, i32) {
    %c0_i32 = arith.constant 0 : i32
    %c0_i32_0 = arith.constant 0 : i32
    %c0_i32_1 = arith.constant 0 : i32
    return %c0_i32, %c0_i32_0 : i32, i32
  }
  func.func @transform_1(%arg0: i32) -> (i32, i32) {
    %c0_i32 = arith.constant 0 : i32
    %c0_i32_0 = arith.constant 0 : i32
    %c0_i32_1 = arith.constant 0 : i32
    return %c0_i32, %c0_i32_0 : i32, i32
  }
  func.func @transform_2(%arg0: i32) -> (i32, i32) {
    %c0_i32 = arith.constant 0 : i32
    %c0_i32_0 = arith.constant 0 : i32
    return %c0_i32, %arg0 : i32, i32
  }
  func.func @transform_3(%arg0: i32) -> (i32, i32) {
    %c0_i32 = arith.constant 0 : i32
    %c0_i32_0 = arith.constant 0 : i32
    return %c0_i32, %arg0 : i32, i32
  }
}

</mosaic_0001>

<llo_original>
// kernel: tpu_custom_call.1
$region0: #{tpu_custom_call.1}
  #allocation0 [shape = 'u32[]', space=smem, size = 0x4, offset = 0x4, fixed_abs, tag = 'smem constant byte address 0x4 - core index']
  #allocation1 [shape = 'u32[144,128]{1,0:T(1,128)}', space=vmem, size = 0x12000, scoped, tag = 'internal scratch']
  %s0 = inlined_call_operand.vmem [shape: f32[2,128], index: 0, kind: input, shape index: {}]
  %s1 = inlined_call_operand.vmem [shape: f32[128,32], index: 1, kind: input, shape index: {}]
  %s2 = inlined_call_operand.hbm [shape: bf16[32,2048], index: 2, kind: input, shape index: {}]
  %s3 = inlined_call_operand.hbm [shape: f32[2,2048], index: 3, kind: output, shape index: {}]
  %s4 = sld [smem:[#allocation0]]
  $region49: #{tpu_custom_call.1} parent=0
    _
  %s6 = ssub.s32 1, %s4
  %s7 = scalar_select 0, %s6, %s4
  $region1: #{tpu_custom_call.1} parent=0
    #allocation2 [shape = 'u8[131072]{0}', space=vmem, size = 0x20000, scoped, tag = 'input window, operand 2']
    #allocation3 [shape = 's32[2]{0}', space=sflag, size = 0x8, scoped, tag = 'scoped memory for tpu_custom_call.1']
    #allocation4 [shape = 's32[2]{0}', space=sflag, size = 0x8, scoped, tag = 'scoped memory for tpu_custom_call.1']
    #allocation5 [shape = 'u8[16384]{0}', space=vmem, size = 0x4000, scoped, tag = 'output window, operand 0']
    %8 = vsyncpa [#allocation3], 0
    %s9 = scalar_lea.sflag [#allocation3], 1
    %10 = vsyncpa %s9, 0
    %11 = vsyncpa [#allocation4], 0
    %s12 = scalar_lea.sflag [#allocation4], 1
    %13 = vsyncpa %s12, 0
    loop: start=0, step=1, limit=4
    $region2: #{tpu_custom_call.1} parent=1 // loop_pre_header
      _
    $region3: #{tpu_custom_call.1} parent=1 // loop_header
      %s15 = sphi 0, %s19
      %p16 = scmp.ge.s32.totalorder %s15, 4
      %s23 = sphi 0, %s23
      %s25 = sphi 0, %s23
      %s26 = sphi 0, %s25
      %s40 = sphi 0, %s26
      %s44 = sphi 0, %s44
      %s46 = sphi 0, %s44
      %s47 = sphi 0, %s46
      %s61 = sphi 0, %s47
      %s67 = sphi 0, %s69
      %s70 = sphi 0, %s67
      %s71 = sphi 0, %s70
      %s87 = sphi 0, %s71
      %s93 = sphi 0, %s95
      %s96 = sphi 0, %s93
      %s97 = sphi 0, %s96
      %s113 = sphi 0, %s97
    $region4: #{tpu_custom_call.1} parent=1 // loop_header_branch
      %18 = sbr.rel (%p16) target = $region8
    $region5: #{tpu_custom_call.1} parent=1 // loop_body
      %s20 = ssub.s32 %s15, 1
      %s21 = ssub.s32 %s15, 2
      %s22 = sadd.s32 %s15, 1
      %s24 = sadd.s32 %s23, 1
      %p27 = scmp.eq.s32.totalorder %s15, 1
      %p28 = scmp.ne.s32.totalorder %s23, %s25
      %p29 = scmp.eq.s32.totalorder %s15, 0
      %p30 = por %p28, %p29
      %p31 = scmp.ne.s32.totalorder %s23, %s25
      %p32 = scmp.eq.s32.totalorder %s20, 1
      %p33 = por %p31, %p32
      %p34 = scmp.ne.s32.totalorder %s25, %s26
      %p35 = scmp.eq.s32.totalorder %s20, 0
      %p36 = por %p34, %p35
      %p37 = scmp.ne.s32.totalorder %s25, %s26
      %p38 = scmp.eq.s32.totalorder %s21, 1
      %p39 = por %p37, %p38
      %p41 = scmp.ne.s32.totalorder %s26, %s40
      %p42 = scmp.eq.s32.totalorder %s21, 0
      %p43 = por %p41, %p42
      %s45 = sadd.s32 %s44, 1
      %p48 = scmp.eq.s32.totalorder %s15, 1
      %p49 = scmp.ne.s32.totalorder %s44, %s46
      %p50 = scmp.eq.s32.totalorder %s15, 0
      %p51 = por %p49, %p50
      %p52 = scmp.ne.s32.totalorder %s44, %s46
      %p53 = scmp.eq.s32.totalorder %s20, 1
      %p54 = por %p52, %p53
      %p55 = scmp.ne.s32.totalorder %s46, %s47
      %p56 = scmp.eq.s32.totalorder %s20, 0
      %p57 = por %p55, %p56
      %p58 = scmp.ne.s32.totalorder %s46, %s47
      %p59 = scmp.eq.s32.totalorder %s21, 1
      %p60 = por %p58, %p59
      %p62 = scmp.ne.s32.totalorder %s47, %s61
      %p63 = scmp.eq.s32.totalorder %s21, 0
      %p64 = por %p62, %p63
      %s65 = ssub.s32 %s15, %s22
      %p66 = scmp.eq.s32.totalorder %s65, 0
      %s68 = sadd.s32 %s67, 1
      %s69 = scalar_select %p66, %s67, %s68
      %p72 = pneg %p66
      %p73 = scmp.eq.s32.totalorder %s15, 1
      %p74 = por %p72, %p73
      %p75 = scmp.ne.s32.totalorder %s67, %s70
      %p76 = scmp.eq.s32.totalorder %s15, 0
      %p77 = por %p75, %p76
      %p78 = scmp.ne.s32.totalorder %s67, %s70
      %p79 = scmp.eq.s32.totalorder %s20, 1
      %p80 = por %p78, %p79
      %p81 = scmp.ne.s32.totalorder %s70, %s71
      %p82 = scmp.eq.s32.totalorder %s20, 0
      %p83 = por %p81, %p82
      %p84 = scmp.ne.s32.totalorder %s70, %s71
      %p85 = scmp.eq.s32.totalorder %s21, 1
      %p86 = por %p84, %p85
      %p88 = scmp.ne.s32.totalorder %s71, %s87
      %p89 = scmp.eq.s32.totalorder %s21, 0
      %p90 = por %p88, %p89
      %s91 = ssub.s32 %s15, %s22
      %p92 = scmp.eq.s32.totalorder %s91, 0
      %s94 = sadd.s32 %s93, 1
      %s95 = scalar_select %p92, %s93, %s94
      %p98 = pneg %p92
      %p99 = scmp.eq.s32.totalorder %s15, 1
      %p100 = por %p98, %p99
      %p101 = scmp.ne.s32.totalorder %s93, %s96
      %p102 = scmp.eq.s32.totalorder %s15, 0
      %p103 = por %p101, %p102
      %p104 = scmp.ne.s32.totalorder %s93, %s96
      %p105 = scmp.eq.s32.totalorder %s20, 1
      %p106 = por %p104, %p105
      %p107 = scmp.ne.s32.totalorder %s96, %s97
      %p108 = scmp.eq.s32.totalorder %s20, 0
      %p109 = por %p107, %p108
      %p110 = scmp.ne.s32.totalorder %s96, %s97
      %p111 = scmp.eq.s32.totalorder %s21, 1
      %p112 = por %p110, %p111
      %p114 = scmp.ne.s32.totalorder %s97, %s113
      %p115 = scmp.eq.s32.totalorder %s21, 0
      %p116 = por %p114, %p115
      %p117 = scmp.le.s32.totalorder 1, %s15
      %p118 = scmp.lt.s32.totalorder %s15, 3
      %p119 = pnand %p117, %p118
      %p120 = pneg %p119
      // Predicated region
      $region9: #{tpu_custom_call.1} parent=5 // pred_check
        _
      $region10: #{tpu_custom_call.1} parent=5 // pred_check_branch
        %122 = sbr.rel (%p119) target = $region12
      $region11: #{tpu_custom_call.1} parent=5 // pred_region
        %s123 = ssub.s32 %s15, 1
        // Predicated region
        $region13: #{tpu_custom_call.1} parent=11 // pred_check
          %p124 = pneg %p36
        $region14: #{tpu_custom_call.1} parent=11 // pred_check_branch
          %126 = sbr.rel (%p124) target = $region16
        $region15: #{tpu_custom_call.1} parent=11 // pred_region
          _
        $region16: #{tpu_custom_call.1} parent=11 // pred_fallthru
          _
        // Predicated region
        $region17: #{tpu_custom_call.1} parent=11 // pred_check
          %p127 = pneg %p57
        $region18: #{tpu_custom_call.1} parent=11 // pred_check_branch
          %129 = sbr.rel (%p127) target = $region20
        $region19: #{tpu_custom_call.1} parent=11 // pred_region
          _
        $region20: #{tpu_custom_call.1} parent=11 // pred_fallthru
          _
      $region12: #{tpu_custom_call.1} parent=5 // pred_fallthru
        _
      %p130 = scmp.lt.s32.totalorder %s15, 2
      // Predicated region
      $region21: #{tpu_custom_call.1} parent=5 // pred_check
        %p131 = pneg %p130
      $region22: #{tpu_custom_call.1} parent=5 // pred_check_branch
        %133 = sbr.rel (%p131) target = $region24
      $region23: #{tpu_custom_call.1} parent=5 // pred_region
        // Predicated region
        $region25: #{tpu_custom_call.1} parent=23 // pred_check
          %p134 = pneg %p77
        $region26: #{tpu_custom_call.1} parent=23 // pred_check_branch
          %136 = sbr.rel (%p134) target = $region28
        $region27: #{tpu_custom_call.1} parent=23 // pred_region
          %s137 = sand.u32 %s67, 1
          %s138 = scalar_lea.sflag [#allocation3], %s137
          %s139 = sand.u32 %s67, 1
          %s140 = smul.addr %s139, 128
          %s141 = scalar_lea.vmem [#allocation2], %s140
          %s142 = smul.u32 8, %s15
          %s144 = ssub.s32 2048, 2048
          %145 = vsyncadd %s138, %s144
          %s146 = smul.addr %s142, 64
          %s147 = scalar_lea.hbm %s2, %s146
          %s148 = sshll.u32 %s141, 4
          %s149 = int_to_ptr.vmem [resolvable:$true] %s148
          %154 = dma.hbm_to_vmem [thread:$0]  %s147, 2048, %s149, %s138, 1024, 512, 32
        $region28: #{tpu_custom_call.1} parent=23 // pred_fallthru
          _
      $region24: #{tpu_custom_call.1} parent=5 // pred_fallthru
        _
      %p155 = scmp.le.s32.totalorder 1, %s15
      %p156 = scmp.lt.s32.totalorder %s15, 3
      %p157 = pnand %p155, %p156
      %p158 = pneg %p157
      // Predicated region
      $region29: #{tpu_custom_call.1} parent=5 // pred_check
        _
      $region30: #{tpu_custom_call.1} parent=5 // pred_check_branch
        %160 = sbr.rel (%p157) target = $region32
      $region31: #{tpu_custom_call.1} parent=5 // pred_region
        %s161 = ssub.s32 %s15, 1
        %s162 = sand.u32 %s70, 1
        %s163 = scalar_lea.sflag [#allocation3], %s162
        %s164 = sand.u32 %s70, 1
        %s165 = smul.addr %s164, 128
        %s166 = scalar_lea.vmem [#allocation2], %s165
        // Predicated region
        $region33: #{tpu_custom_call.1} parent=31 // pred_check
          %p167 = pneg %p83
        $region34: #{tpu_custom_call.1} parent=31 // pred_check_branch
          %169 = sbr.rel (%p167) target = $region36
        $region35: #{tpu_custom_call.1} parent=31 // pred_region
          %170 = dma.done %s163, 2048
        $region36: #{tpu_custom_call.1} parent=31 // pred_fallthru
          _
        %p171 = pneg %p36
        %p172 = pneg %p33
        %p173 = pneg %p57
        %p174 = pneg %p54
        %s175 = sand.u32 %s70, 1
        %s176 = scalar_lea.sflag [#allocation3], %s175
        %s177 = sand.u32 %s70, 1
        %s178 = smul.addr %s177, 128
        %s179 = scalar_lea.vmem [#allocation2], %s178
        %p180 = pneg %p83
        %p181 = pneg %p80
        %p182 = pneg %p109
        %p183 = pneg %p106
        %s184 = sand.u32 %s96, 1
        %s185 = scalar_lea.sflag [#allocation4], %s184
        %s186 = sand.u32 %s96, 1
        %s187 = smul.addr %s186, 16
        %s188 = scalar_lea.vmem [#allocation5], %s187
        %s189 = smul.u32 8, %s20
        %s190 = smul.u32 8, %s20
        %v192 = vld [vmem:[%s0] sm:$0x3]
        %v193 = vmul.f32 %v192, %v192
        %vm194 = vcmask 1041408
        %v195 = vsel %vm194, %v193, 0.0
        %196 = vadd.xlane.f32.xlu0 %v195
        %v197 = vpop.xlane.xlu0 %196
        %v198 = vmax.f32 %v197, 1e-16
        %v199 = vrsqrt.pop %v198
        %v200 = vmul.f32 %v192, %v199
        %v201 = vld [vmem:[%s1] sm:$0xff]
        %v202 = vld [vmem:[%s1 + $0x8] sm:$0xff]
        %v203 = vld [vmem:[%s1 + $0x10] sm:$0xff]
        %v204 = vld [vmem:[%s1 + $0x18] sm:$0xff]
        %v205 = vld [vmem:[%s1 + $0x20] sm:$0xff]
        %v206 = vld [vmem:[%s1 + $0x28] sm:$0xff]
        %v207 = vld [vmem:[%s1 + $0x30] sm:$0xff]
        %v208 = vld [vmem:[%s1 + $0x38] sm:$0xff]
        %v209 = vld [vmem:[%s1 + $0x40] sm:$0xff]
        %v210 = vld [vmem:[%s1 + $0x48] sm:$0xff]
        %v211 = vld [vmem:[%s1 + $0x50] sm:$0xff]
        %v212 = vld [vmem:[%s1 + $0x58] sm:$0xff]
        %v213 = vld [vmem:[%s1 + $0x60] sm:$0xff]
        %v214 = vld [vmem:[%s1 + $0x68] sm:$0xff]
        %v215 = vld [vmem:[%s1 + $0x70] sm:$0xff]
        %v216 = vld [vmem:[%s1 + $0x78] sm:$0xff]
        %217 = vmatprep.subr.mxu0 0.0
        %218 = vmatpush1.msra.mxu0 %v216
        %219 = vmatprep.subr.mxu0 0.0
        %220 = vmatpush1.msra.mxu0 %v215
        %221 = vmatprep.subr.mxu0 0.0
        %222 = vmatpush1.msra.mxu0 %v214
        %223 = vmatprep.subr.mxu0 0.0
        %224 = vmatpush1.msra.mxu0 %v213
        %225 = vmatprep.subr.mxu0 0.0
        %226 = vmatpush1.msra.mxu0 %v212
        %227 = vmatprep.subr.mxu0 0.0
        %228 = vmatpush1.msra.mxu0 %v211
        %229 = vmatprep.subr.mxu0 0.0
        %230 = vmatpush1.msra.mxu0 %v210
        %231 = vmatprep.subr.mxu0 0.0
        %232 = vmatpush1.msra.mxu0 %v209
        %233 = vmatprep.subr.mxu0 0.0
        %234 = vmatpush1.msra.mxu0 %v208
        %235 = vmatprep.subr.mxu0 0.0
        %236 = vmatpush1.msra.mxu0 %v207
        %237 = vmatprep.subr.mxu0 0.0
        %238 = vmatpush1.msra.mxu0 %v206
        %239 = vmatprep.subr.mxu0 0.0
        %240 = vmatpush1.msra.mxu0 %v205
        %241 = vmatprep.subr.mxu0 0.0
        %242 = vmatpush1.msra.mxu0 %v204
        %243 = vmatprep.subr.mxu0 0.0
        %244 = vmatpush1.msra.mxu0 %v203
        %245 = vmatprep.subr.mxu0 0.0
        %246 = vmatpush1.msra.mxu0 %v202
        %247 = vmatprep.subr.mxu0 0.0
        %248 = vmatpush1.msra.mxu0 %v201
        %249 = vmatprep.subr.mxu0 0.0
        %250 = vmatpush2.msra.mxu0 0.0
        %251 = vmatprep.subr.mxu0 0.0
        %252 = vmatpush2.msra.mxu0 0.0
        %253 = vmatprep.subr.mxu0 0.0
        %254 = vmatpush2.msra.mxu0 0.0
        %255 = vmatprep.subr.mxu0 0.0
        %256 = vmatpush2.msra.mxu0 0.0
        %257 = vmatprep.subr.mxu0 0.0
        %258 = vmatpush2.msra.mxu0 0.0
        %259 = vmatprep.subr.mxu0 0.0
        %260 = vmatpush2.msra.mxu0 0.0
        %261 = vmatprep.subr.mxu0 0.0
        %262 = vmatpush2.msra.mxu0 0.0
        %263 = vmatprep.subr.mxu0 0.0
        %264 = vmatpush2.msra.mxu0 0.0
        %265 = vmatprep.subr.mxu0 0.0
        %266 = vmatpush2.msra.mxu0 0.0
        %267 = vmatprep.subr.mxu0 0.0
        %268 = vmatpush2.msra.mxu0 0.0
        %269 = vmatprep.subr.mxu0 0.0
        %270 = vmatpush2.msra.mxu0 0.0
        %271 = vmatprep.subr.mxu0 0.0
        %272 = vmatpush2.msra.mxu0 0.0
        %273 = vmatprep.subr.mxu0 0.0
        %274 = vmatpush2.msra.mxu0 0.0
        %275 = vmatprep.subr.mxu0 0.0
        %276 = vmatpush2.msra.mxu0 0.0
        %277 = vmatprep.subr.mxu0 0.0
        %278 = vmatpush2.msra.mxu0 0.0
        %279 = vmatprep.subr.mxu0 0.0
        %280 = vmatpush2.msra.mxu0 0.0
        %281 = vmatprep.mubr.f32.mxu0 0.0
        %282 = vmatmul.mubr.f32.gmra.mxu0 %v200
        %v283 = vpop.f32.mrf.mxu0
        %v284 = vadd.f32 0.0, %v283
        %v285 = vpop.f32.mrf.mxu0
        %286 = vdwg.mxu0
        %v287 = vlaneseq
        %v288 = vand.u32 %v287, 127
        %vm289 = vcmask 254976
        %v290 = vsel %vm289, %v284, -inf
        %291 = vmax.xlane.f32.xlu0 %v290
        %v292 = vpop.xlane.xlu0 %291
        %vm293 = vcmp.eq.f32.partialorder %v284, %v292
        %v294 = vsel %vm293, %v288, 32
        %v295 = vsel %vm289, %v294, 2147483647
        %v296 = vand.u32 %v295, 65535
        %v297 = vshra.s32 %v295, 16
        %v298 = vcvt.s32.f32 %v296
        %v299 = vcvt.s32.f32 %v297
        %300 = vmin.xlane.f32.xlu0 %v299
        %v301 = vpop.xlane.xlu0 %300
        %vm302 = vcmp.eq.f32.partialorder %v299, %v301
        %v303 = vsel %vm302, %v298, inf
        %304 = vmin.xlane.f32.xlu0 %v303
        %v305 = vpop.xlane.xlu0 %304
        %v306 = vcvt.f32.s32 %v305
        %v307 = vcvt.f32.s32 %v301
        %v308 = vshll.u32 %v307, 16
        %v309 = vadd.s32 %v308, %v306
        %vm310 = vcmp.eq.s32.totalorder %v288, %v309
        %v311 = vmax.f32 %v284, 0.0
        %v312 = vsel %vm310, %v311, 0.0
        %v313 = vadd.f32 %v312, 0.0
        %v314 = vsel %vm310, -inf, %v284
        %v315 = vsel %vm289, %v314, -inf
        %316 = vmax.xlane.f32.xlu0 %v315
        %v317 = vpop.xlane.xlu0 %316
        %vm318 = vcmp.eq.f32.partialorder %v314, %v317
        %v319 = vsel %vm318, %v288, 32
        %v320 = vsel %vm289, %v319, 2147483647
        %v321 = vand.u32 %v320, 65535
        %v322 = vshra.s32 %v320, 16
        %v323 = vcvt.s32.f32 %v321
        %v324 = vcvt.s32.f32 %v322
        %325 = vmin.xlane.f32.xlu0 %v324
        %v326 = vpop.xlane.xlu0 %325
        %vm327 = vcmp.eq.f32.partialorder %v324, %v326
        %v328 = vsel %vm327, %v323, inf
        %329 = vmin.xlane.f32.xlu0 %v328
        %v330 = vpop.xlane.xlu0 %329
        %v331 = vcvt.f32.s32 %v330
        %v332 = vcvt.f32.s32 %v326
        %v333 = vshll.u32 %v332, 16
        %v334 = vadd.s32 %v333, %v331
        %vm335 = vcmp.eq.s32.totalorder %v288, %v334
        %v336 = vsel %vm335, %v311, 0.0
        %v337 = vadd.f32 %v313, %v336
        %v338 = vsel %vm335, -inf, %v314
        %v339 = vsel %vm289, %v338, -inf
        %340 = vmax.xlane.f32.xlu0 %v339
        %v341 = vpop.xlane.xlu0 %340
        %vm342 = vcmp.eq.f32.partialorder %v338, %v341
        %v343 = vsel %vm342, %v288, 32
        %v344 = vsel %vm289, %v343, 2147483647
        %v345 = vand.u32 %v344, 65535
        %v346 = vshra.s32 %v344, 16
        %v347 = vcvt.s32.f32 %v345
        %v348 = vcvt.s32.f32 %v346
        %349 = vmin.xlane.f32.xlu0 %v348
        %v350 = vpop.xlane.xlu0 %349
        %vm351 = vcmp.eq.f32.partialorder %v348, %v350
        %v352 = vsel %vm351, %v347, inf
        %353 = vmin.xlane.f32.xlu0 %v352
        %v354 = vpop.xlane.xlu0 %353
        %v355 = vcvt.f32.s32 %v354
        %v356 = vcvt.f32.s32 %v350
        %v357 = vshll.u32 %v356, 16
        %v358 = vadd.s32 %v357, %v355
        %vm359 = vcmp.eq.s32.totalorder %v288, %v358
        %v360 = vsel %vm359, %v311, 0.0
        %v361 = vadd.f32 %v337, %v360
        %v362 = vsel %vm359, -inf, %v338
        %v363 = vsel %vm289, %v362, -inf
        %364 = vmax.xlane.f32.xlu0 %v363
        %v365 = vpop.xlane.xlu0 %364
        %vm366 = vcmp.eq.f32.partialorder %v362, %v365
        %v367 = vsel %vm366, %v288, 32
        %v368 = vsel %vm289, %v367, 2147483647
        %v369 = vand.u32 %v368, 65535
        %v370 = vshra.s32 %v368, 16
        %v371 = vcvt.s32.f32 %v369
        %v372 = vcvt.s32.f32 %v370
        %373 = vmin.xlane.f32.xlu0 %v372
        %v374 = vpop.xlane.xlu0 %373
        %vm375 = vcmp.eq.f32.partialorder %v372, %v374
        %v376 = vsel %vm375, %v371, inf
        %377 = vmin.xlane.f32.xlu0 %v376
        %v378 = vpop.xlane.xlu0 %377
        %v379 = vcvt.f32.s32 %v378
        %v380 = vcvt.f32.s32 %v374
        %v381 = vshll.u32 %v380, 16
        %v382 = vadd.s32 %v381, %v379
        %vm383 = vcmp.eq.s32.totalorder %v288, %v382
        %v384 = vsel %vm383, %v311, 0.0
        %v385 = vadd.f32 %v361, %v384
        %v386 = vsel %vm289, %v385, 0.0
        %387 = vadd.xlane.f32.xlu0 %v386
        %v388 = vpop.xlane.xlu0 %387
        %v389 = vmax.f32 %v388, 1e-12
        %v390 = vrcp.pop %v389
        %v391 = vmul.f32 %v385, %v390
        %v392 = vpack.c.bf16 %v391, %v391
        %v393 = vld [vmem:[%s166] sm:$0xff]
        %v394 = vld [vmem:[%s166 + $0x8] sm:$0xff]
        %v395 = vld [vmem:[%s166 + $0x10] sm:$0xff]
        %v396 = vld [vmem:[%s166 + $0x18] sm:$0xff]
        %v397 = vld [vmem:[%s166 + $0x20] sm:$0xff]
        %v398 = vld [vmem:[%s166 + $0x28] sm:$0xff]
        %v399 = vld [vmem:[%s166 + $0x30] sm:$0xff]
        %v400 = vld [vmem:[%s166 + $0x38] sm:$0xff]
        %v401 = vld [vmem:[%s166 + $0x40] sm:$0xff]
        %v402 = vld [vmem:[%s166 + $0x48] sm:$0xff]
        %v403 = vld [vmem:[%s166 + $0x50] sm:$0xff]
        %v404 = vld [vmem:[%s166 + $0x58] sm:$0xff]
        %v405 = vld [vmem:[%s166 + $0x60] sm:$0xff]
        %v406 = vld [vmem:[%s166 + $0x68] sm:$0xff]
        %v407 = vld [vmem:[%s166 + $0x70] sm:$0xff]
        %v408 = vld [vmem:[%s166 + $0x78] sm:$0xff]
        %v425 = vunpack.c.l.b16 %v393
        %v426 = vunpack.c.h.b16 %v393
        %v427 = vunpack.c.l.b16 %v394
        %v428 = vunpack.c.h.b16 %v394
        %v429 = vunpack.c.l.b16 %v395
        %v430 = vunpack.c.h.b16 %v395
        %v431 = vunpack.c.l.b16 %v396
        %v432 = vunpack.c.h.b16 %v396
        %v433 = vunpack.c.l.b16 %v397
        %v434 = vunpack.c.h.b16 %v397
        %v435 = vunpack.c.l.b16 %v398
        %v436 = vunpack.c.h.b16 %v398
        %v437 = vunpack.c.l.b16 %v399
        %v438 = vunpack.c.h.b16 %v399
        %v439 = vunpack.c.l.b16 %v400
        %v440 = vunpack.c.h.b16 %v400
        %v441 = vunpack.c.l.b16 %v401
        %v442 = vunpack.c.h.b16 %v401
        %v443 = vunpack.c.l.b16 %v402
        %v444 = vunpack.c.h.b16 %v402
        %v445 = vunpack.c.l.b16 %v403
        %v446 = vunpack.c.h.b16 %v403
        %v447 = vunpack.c.l.b16 %v404
        %v448 = vunpack.c.h.b16 %v404
        %v449 = vunpack.c.l.b16 %v405
        %v450 = vunpack.c.h.b16 %v405
        %v451 = vunpack.c.l.b16 %v406
        %v452 = vunpack.c.h.b16 %v406
        %v453 = vunpack.c.l.b16 %v407
        %v454 = vunpack.c.h.b16 %v407
        %v455 = vunpack.c.l.b16 %v408
        %v456 = vunpack.c.h.b16 %v408
        %v457 = vpack.c.b16 %v433, %v425
        %v458 = vpack.c.b16 %v434, %v426
        %v459 = vpack.c.b16 %v435, %v427
        %v460 = vpack.c.b16 %v436, %v428
        %v461 = vpack.c.b16 %v437, %v429
        %v462 = vpack.c.b16 %v438, %v430
        %v463 = vpack.c.b16 %v439, %v431
        %v464 = vpack.c.b16 %v440, %v432
        %v465 = vpack.c.b16 %v449, %v441
        %v466 = vpack.c.b16 %v450, %v442
        %v467 = vpack.c.b16 %v451, %v443
        %v468 = vpack.c.b16 %v452, %v444
        %v469 = vpack.c.b16 %v453, %v445
        %v470 = vpack.c.b16 %v454, %v446
        %v471 = vpack.c.b16 %v455, %v447
        %v472 = vpack.c.b16 %v456, %v448
        %vm489 = vcmask 261120
        %v491 = vsel %vm489, %v392, 0
        %493 = vmatprep.subr.bf16.mxu0 0
        %494 = vmatpush1.bf16.msra.mxu0 0
        %495 = vmatprep.subr.bf16.mxu0 0
        %496 = vmatpush1.bf16.msra.mxu0 0
        %497 = vmatprep.subr.bf16.mxu0 0
        %498 = vmatpush1.bf16.msra.mxu0 0
        %499 = vmatprep.subr.bf16.mxu0 0
        %500 = vmatpush1.bf16.msra.mxu0 0
        %501 = vmatprep.subr.bf16.mxu0 0
        %502 = vmatpush1.bf16.msra.mxu0 0
        %503 = vmatprep.subr.bf16.mxu0 0
        %504 = vmatpush1.bf16.msra.mxu0 0
        %505 = vmatprep.subr.bf16.mxu0 %v466
        %506 = vmatpush1.bf16.msra.mxu0 %v465
        %507 = vmatprep.subr.bf16.mxu0 %v458
        %508 = vmatpush1.bf16.msra.mxu0 %v457
        %509 = vmatprep.subr.bf16.mxu0 0
        %510 = vmatpush2.bf16.msra.mxu0 0
        %511 = vmatprep.subr.bf16.mxu0 0
        %512 = vmatpush2.bf16.msra.mxu0 0
        %513 = vmatprep.subr.bf16.mxu0 0
        %514 = vmatpush2.bf16.msra.mxu0 0
        %515 = vmatprep.subr.bf16.mxu0 0
        %516 = vmatpush2.bf16.msra.mxu0 0
        %517 = vmatprep.subr.bf16.mxu0 0
        %518 = vmatpush2.bf16.msra.mxu0 0
        %519 = vmatprep.subr.bf16.mxu0 0
        %520 = vmatpush2.bf16.msra.mxu0 0
        %521 = vmatprep.subr.bf16.mxu0 0
        %522 = vmatpush2.bf16.msra.mxu0 0
        %523 = vmatprep.subr.bf16.mxu0 0
        %524 = vmatpush2.bf16.msra.mxu0 0
        %525 = vmatprep.mubr.bf16.mxu0 0
        %526 = vmatmul.mubr.bf16.gmra.mxu0 %v491
        %v527 = vpop.f32.mrf.mxu0
        %v528 = vadd.f32 0.0, %v527
        %v529 = vpop.f32.mrf.mxu0
        %v530 = vadd.f32 0.0, %v529
        %v531 = vpop.f32.mrf.mxu0
        %v532 = vpop.f32.mrf.mxu0
        %533 = vdwg.mxu0
        %534 = vmatprep.subr.bf16.mxu0 0
        %535 = vmatpush1.bf16.msra.mxu0 0
        %536 = vmatprep.subr.bf16.mxu0 0
        %537 = vmatpush1.bf16.msra.mxu0 0
        %538 = vmatprep.subr.bf16.mxu0 0
        %539 = vmatpush1.bf16.msra.mxu0 0
        %540 = vmatprep.subr.bf16.mxu0 0
        %541 = vmatpush1.bf16.msra.mxu0 0
        %542 = vmatprep.subr.bf16.mxu0 0
        %543 = vmatpush1.bf16.msra.mxu0 0
        %544 = vmatprep.subr.bf16.mxu0 0
        %545 = vmatpush1.bf16.msra.mxu0 0
        %546 = vmatprep.subr.bf16.mxu0 %v468
        %547 = vmatpush1.bf16.msra.mxu0 %v467
        %548 = vmatprep.subr.bf16.mxu0 %v460
        %549 = vmatpush1.bf16.msra.mxu0 %v459
        %550 = vmatprep.subr.bf16.mxu0 0
        %551 = vmatpush2.bf16.msra.mxu0 0
        %552 = vmatprep.subr.bf16.mxu0 0
        %553 = vmatpush2.bf16.msra.mxu0 0
        %554 = vmatprep.subr.bf16.mxu0 0
        %555 = vmatpush2.bf16.msra.mxu0 0
        %556 = vmatprep.subr.bf16.mxu0 0
        %557 = vmatpush2.bf16.msra.mxu0 0
        %558 = vmatprep.subr.bf16.mxu0 0
        %559 = vmatpush2.bf16.msra.mxu0 0
        %560 = vmatprep.subr.bf16.mxu0 0
        %561 = vmatpush2.bf16.msra.mxu0 0
        %562 = vmatprep.subr.bf16.mxu0 0
        %563 = vmatpush2.bf16.msra.mxu0 0
        %564 = vmatprep.subr.bf16.mxu0 0
        %565 = vmatpush2.bf16.msra.mxu0 0
        %566 = vmatprep.mubr.bf16.mxu0 0
        %567 = vmatmul.mubr.bf16.gmra.mxu0 %v491
        %v568 = vpop.f32.mrf.mxu0
        %v569 = vadd.f32 0.0, %v568
        %v570 = vpop.f32.mrf.mxu0
        %v571 = vadd.f32 0.0, %v570
        %v572 = vpop.f32.mrf.mxu0
        %v573 = vpop.f32.mrf.mxu0
        %574 = vdwg.mxu0
        %575 = vmatprep.subr.bf16.mxu0 0
        %576 = vmatpush1.bf16.msra.mxu0 0
        %577 = vmatprep.subr.bf16.mxu0 0
        %578 = vmatpush1.bf16.msra.mxu0 0
        %579 = vmatprep.subr.bf16.mxu0 0
        %580 = vmatpush1.bf16.msra.mxu0 0
        %581 = vmatprep.subr.bf16.mxu0 0
        %582 = vmatpush1.bf16.msra.mxu0 0
        %583 = vmatprep.subr.bf16.mxu0 0
        %584 = vmatpush1.bf16.msra.mxu0 0
        %585 = vmatprep.subr.bf16.mxu0 0
        %586 = vmatpush1.bf16.msra.mxu0 0
        %587 = vmatprep.subr.bf16.mxu0 %v470
        %588 = vmatpush1.bf16.msra.mxu0 %v469
        %589 = vmatprep.subr.bf16.mxu0 %v462
        %590 = vmatpush1.bf16.msra.mxu0 %v461
        %591 = vmatprep.subr.bf16.mxu0 0
        %592 = vmatpush2.bf16.msra.mxu0 0
        %593 = vmatprep.subr.bf16.mxu0 0
        %594 = vmatpush2.bf16.msra.mxu0 0
        %595 = vmatprep.subr.bf16.mxu0 0
        %596 = vmatpush2.bf16.msra.mxu0 0
        %597 = vmatprep.subr.bf16.mxu0 0
        %598 = vmatpush2.bf16.msra.mxu0 0
        %599 = vmatprep.subr.bf16.mxu0 0
        %600 = vmatpush2.bf16.msra.mxu0 0
        %601 = vmatprep.subr.bf16.mxu0 0
        %602 = vmatpush2.bf16.msra.mxu0 0
        %603 = vmatprep.subr.bf16.mxu0 0
        %604 = vmatpush2.bf16.msra.mxu0 0
        %605 = vmatprep.subr.bf16.mxu0 0
        %606 = vmatpush2.bf16.msra.mxu0 0
        %607 = vmatprep.mubr.bf16.mxu0 0
        %608 = vmatmul.mubr.bf16.gmra.mxu0 %v491
        %v609 = vpop.f32.mrf.mxu0
        %v610 = vadd.f32 0.0, %v609
        %v611 = vpop.f32.mrf.mxu0
        %v612 = vadd.f32 0.0, %v611
        %v613 = vpop.f32.mrf.mxu0
        %v614 = vpop.f32.mrf.mxu0
        %615 = vdwg.mxu0
        %616 = vmatprep.subr.bf16.mxu0 0
        %617 = vmatpush1.bf16.msra.mxu0 0
        %618 = vmatprep.subr.bf16.mxu0 0
        %619 = vmatpush1.bf16.msra.mxu0 0
        %620 = vmatprep.subr.bf16.mxu0 0
        %621 = vmatpush1.bf16.msra.mxu0 0
        %622 = vmatprep.subr.bf16.mxu0 0
        %623 = vmatpush1.bf16.msra.mxu0 0
        %624 = vmatprep.subr.bf16.mxu0 0
        %625 = vmatpush1.bf16.msra.mxu0 0
        %626 = vmatprep.subr.bf16.mxu0 0
        %627 = vmatpush1.bf16.msra.mxu0 0
        %628 = vmatprep.subr.bf16.mxu0 %v472
        %629 = vmatpush1.bf16.msra.mxu0 %v471
        %630 = vmatprep.subr.bf16.mxu0 %v464
        %631 = vmatpush1.bf16.msra.mxu0 %v463
        %632 = vmatprep.subr.bf16.mxu0 0
        %633 = vmatpush2.bf16.msra.mxu0 0
        %634 = vmatprep.subr.bf16.mxu0 0
        %635 = vmatpush2.bf16.msra.mxu0 0
        %636 = vmatprep.subr.bf16.mxu0 0
        %637 = vmatpush2.bf16.msra.mxu0 0
        %638 = vmatprep.subr.bf16.mxu0 0
        %639 = vmatpush2.bf16.msra.mxu0 0
        %640 = vmatprep.subr.bf16.mxu0 0
        %641 = vmatpush2.bf16.msra.mxu0 0
        %642 = vmatprep.subr.bf16.mxu0 0
        %643 = vmatpush2.bf16.msra.mxu0 0
        %644 = vmatprep.subr.bf16.mxu0 0
        %645 = vmatpush2.bf16.msra.mxu0 0
        %646 = vmatprep.subr.bf16.mxu0 0
        %647 = vmatpush2.bf16.msra.mxu0 0
        %648 = vmatprep.mubr.bf16.mxu0 0
        %649 = vmatmul.mubr.bf16.gmra.mxu0 %v491
        %v650 = vpop.f32.mrf.mxu0
        %v651 = vadd.f32 0.0, %v650
        %v652 = vpop.f32.mrf.mxu0
        %v653 = vadd.f32 0.0, %v652
        %v654 = vpop.f32.mrf.mxu0
        %v655 = vpop.f32.mrf.mxu0
        %656 = vdwg.mxu0
        %v665 = vcombine.low %v528, %v530
        %v666 = vcombine.low %v569, %v571
        %v668 = vunpack.c.l.s4 1983009808
        %v669 = vunpack.c.0.s8 %v668
        %v670 = vlaneseq
        %v671 = vshrl.u32 %v670, 7
        %v672 = vsub.s32 %v669, %v671
        %v673 = vrot.slane %v665, %v672
        %v675 = vunpack.c.l.s4 1983009808
        %v676 = vunpack.c.0.s8 %v675
        %v677 = vlaneseq
        %v678 = vshrl.u32 %v677, 7
        %v679 = vsub.s32 %v676, %v678
        %v680 = vrot.slane %v666, %v679
        %v681 = vcombine.low %v673, %v680
        %v682 = vcombine.low %v610, %v612
        %v683 = vcombine.low %v651, %v653
        %v685 = vunpack.c.l.s4 1983009808
        %v686 = vunpack.c.0.s8 %v685
        %v687 = vlaneseq
        %v688 = vshrl.u32 %v687, 7
        %v689 = vsub.s32 %v686, %v688
        %v690 = vrot.slane %v682, %v689
        %v692 = vunpack.c.l.s4 1983009808
        %v693 = vunpack.c.0.s8 %v692
        %v694 = vlaneseq
        %v695 = vshrl.u32 %v694, 7
        %v696 = vsub.s32 %v693, %v695
        %v697 = vrot.slane %v683, %v696
        %v698 = vcombine.low %v690, %v697
        %701 = vst [vmem:[%s188] sm:$0xff] %v681
        %702 = vst [vmem:[%s188 + $0x8] sm:$0xff] %v698
        %s703 = sand.u32 %s96, 1
        %s704 = scalar_lea.sflag [#allocation4], %s703
        %s705 = sand.u32 %s96, 1
        %s706 = smul.addr %s705, 16
        %s707 = scalar_lea.vmem [#allocation5], %s706
        // Predicated region
        $region37: #{tpu_custom_call.1} parent=31 // pred_check
          %p708 = pneg %p106
        $region38: #{tpu_custom_call.1} parent=31 // pred_check_branch
          %710 = sbr.rel (%p708) target = $region40
        $region39: #{tpu_custom_call.1} parent=31 // pred_region
          %s711 = smul.u32 8, %s20
          %s713 = ssub.s32 256, 256
          %714 = vsyncadd %s704, %s713
          %s715 = smul.addr %s711, 32
          %s716 = scalar_lea.hbm %s3, %s715
          %s718 = sshll.u32 %s707, 4
          %s719 = int_to_ptr.vmem [resolvable:$true] %s718
          %721 = dma.vmem_to_hbm [thread:$0]  %s719, 256, %s716, %s704
        $region40: #{tpu_custom_call.1} parent=31 // pred_fallthru
          _
      $region32: #{tpu_custom_call.1} parent=5 // pred_fallthru
        _
      %p722 = scmp.le.s32.totalorder 2, %s15
      // Predicated region
      $region41: #{tpu_custom_call.1} parent=5 // pred_check
        %p723 = pneg %p722
      $region42: #{tpu_custom_call.1} parent=5 // pred_check_branch
        %725 = sbr.rel (%p723) target = $region44
      $region43: #{tpu_custom_call.1} parent=5 // pred_region
        %s726 = ssub.s32 %s15, 2
        // Predicated region
        $region45: #{tpu_custom_call.1} parent=43 // pred_check
          %p727 = pneg %p112
        $region46: #{tpu_custom_call.1} parent=43 // pred_check_branch
          %729 = sbr.rel (%p727) target = $region48
        $region47: #{tpu_custom_call.1} parent=43 // pred_region
          %s730 = sand.u32 %s97, 1
          %s731 = scalar_lea.sflag [#allocation4], %s730
          %s732 = sand.u32 %s97, 1
          %s733 = smul.addr %s732, 16
          %s734 = scalar_lea.vmem [#allocation5], %s733
          %735 = dma.done %s731, 256
        $region48: #{tpu_custom_call.1} parent=43 // pred_fallthru
          _
      $region44: #{tpu_custom_call.1} parent=5 // pred_fallthru
        _
    $region6: #{tpu_custom_call.1} parent=1 // loop_footer
      %s19 = sadd.s32 1, %s15
    $region7: #{tpu_custom_call.1} parent=1 // loop_footer_branch
      %14 = sbr.rel target = $region3
    $region8: #{tpu_custom_call.1} parent=1 // loop_exit
      _
    %736 = vsyncpa [#allocation3], 1
    %s737 = scalar_lea.sflag [#allocation3], 1
    %738 = vsyncpa %s737, 1
    %739 = vsyncpa [#allocation4], 1
    %s740 = scalar_lea.sflag [#allocation4], 1
    %741 = vsyncpa %s740, 1

</llo_original>
